<compile_context>
chip_gen: v7x
topology: tpu7x:2x2x1
jax: 0.10.0
libtpu: 0.0.40
codegen_flags: <defaults>
</compile_context>

<pallas_src>
import functools

import jax
import jax.numpy as jnp
import numpy as np
from jax.experimental import pallas as pl
from jax.experimental.pallas import tpu as pltpu

_VMEM_LIMIT = 48 * 1024 * 1024  # headroom below v7x's 64 MiB physical VMEM


# ----------------------------- Linear projection kernels -----------------------------

def _linear_kernel(x_ref, w_ref, o_ref):
    o_ref[...] = jnp.dot(
        x_ref[...], w_ref[...], preferred_element_type=jnp.float32
    ).astype(o_ref.dtype)


def _linear_bias_kernel(x_ref, w_ref, b_ref, o_ref):
    acc = jnp.dot(x_ref[...], w_ref[...], preferred_element_type=jnp.float32)
    o_ref[...] = (acc + b_ref[...].astype(jnp.float32)).astype(o_ref.dtype)


def _fused_linear_kernel(x_ref, *refs, n_out):
    # refs = (w_0 .. w_{n-1}, o_0 .. o_{n-1}); x tile is loaded once and reused.
    x = x_ref[...]
    for i in range(n_out):
        w_ref = refs[i]
        o_ref = refs[n_out + i]
        o_ref[...] = jnp.dot(
            x, w_ref[...], preferred_element_type=jnp.float32
        ).astype(o_ref.dtype)


def pallas_linear(x2d, w, b=None, *, tm=512):
    """x2d: (M, K), w: (K, N), b: (N,) or None -> (M, N). Row-tiled, pipelined."""
    M, K = x2d.shape
    _, N = w.shape
    tm = min(tm, M)
    grid = (pl.cdiv(M, tm),)
    x_spec = pl.BlockSpec((tm, K), lambda i: (i, 0))
    w_spec = pl.BlockSpec((K, N), lambda i: (0, 0))
    o_spec = pl.BlockSpec((tm, N), lambda i: (i, 0))
    cparams = pltpu.CompilerParams(
        dimension_semantics=("parallel",), vmem_limit_bytes=_VMEM_LIMIT)
    out_shape = jax.ShapeDtypeStruct((M, N), x2d.dtype)
    if b is None:
        return pl.pallas_call(
            _linear_kernel, out_shape=out_shape, grid=grid,
            in_specs=[x_spec, w_spec], out_specs=o_spec,
            compiler_params=cparams,
        )(x2d, w)
    b_spec = pl.BlockSpec((1, N), lambda i: (0, 0))
    return pl.pallas_call(
        _linear_bias_kernel, out_shape=out_shape, grid=grid,
        in_specs=[x_spec, w_spec, b_spec], out_specs=o_spec,
        compiler_params=cparams,
    )(x2d, w, b.reshape(1, N))


def pallas_fused_linear(x2d, ws, *, tm=512):
    """One pallas_call computing x2d @ w for every w in ws (activation read once)."""
    M, K = x2d.shape
    tm = min(tm, M)
    grid = (pl.cdiv(M, tm),)
    in_specs = [pl.BlockSpec((tm, K), lambda i: (i, 0))]
    out_specs, out_shapes = [], []
    for w in ws:
        N = w.shape[1]
        in_specs.append(pl.BlockSpec((K, N), lambda i: (0, 0)))
        out_specs.append(pl.BlockSpec((tm, N), lambda i: (i, 0)))
        out_shapes.append(jax.ShapeDtypeStruct((M, N), x2d.dtype))
    cparams = pltpu.CompilerParams(
        dimension_semantics=("parallel",), vmem_limit_bytes=_VMEM_LIMIT)
    return pl.pallas_call(
        functools.partial(_fused_linear_kernel, n_out=len(ws)),
        out_shape=tuple(out_shapes), grid=grid,
        in_specs=in_specs, out_specs=tuple(out_specs),
        compiler_params=cparams,
    )(x2d, *ws)


# ----------------------------- Attention kernels -----------------------------

def _attention_body(q_ref, k_ref, v_ref, keep, o_ref, *, scale, heads, dim_head):
    # q_ref: (1, tq, H*d), k_ref/v_ref: (1, M, H*d), o_ref: (1, tq, H*d)
    q_all = q_ref[0] * scale          # pre-scale q on the small (tq, H*d) tile
    k_all = k_ref[0]
    v_all = v_ref[0]
    neg = -jnp.finfo(jnp.float32).max
    outs = []
    for h in range(heads):            # static unroll; heads is small
        lo = h * dim_head
        hi = lo + dim_head
        q_h = q_all[:, lo:hi]
        k_h = k_all[:, lo:hi]
        v_h = v_all[:, lo:hi]
        # Contract last dims directly (no explicit K transpose); f32 accumulation.
        sim = jax.lax.dot_general(
            q_h, k_h, (((1,), (1,)), ((), ())),
            preferred_element_type=jnp.float32)                  # (tq, M) f32
        if keep is not None:
            sim = jnp.where(keep, sim, neg)
        m = jnp.max(sim, axis=-1, keepdims=True)
        p = jnp.exp(sim - m)
        denom = jnp.sum(p, axis=-1, keepdims=True)
        pv = jnp.dot(p.astype(v_h.dtype), v_h,
                     preferred_element_type=jnp.float32)         # (tq, d) f32
        # Normalize the small (tq, d) result instead of the (tq, M) probability matrix.
        outs.append(pv * (1.0 / denom))
    # Single lane-dense store of the merged (tq, H*d) slab.
    o_ref[0] = jnp.concatenate(outs, axis=-1).astype(o_ref.dtype)


def _attn_kernel(q_ref, k_ref, v_ref, o_ref, *, scale, heads, dim_head):
    _attention_body(q_ref, k_ref, v_ref, None, o_ref,
                    scale=scale, heads=heads, dim_head=dim_head)


def _attn_mask_kernel(q_ref, k_ref, v_ref, mask_ref, o_ref, *, scale, heads, dim_head):
    keep = mask_ref[...] != 0          # (1, M) -> broadcasts over (tq, M)
    _attention_body(q_ref, k_ref, v_ref, keep, o_ref,
                    scale=scale, heads=heads, dim_head=dim_head)


def pallas_attention(q, k, v, scale, *, heads, dim_head, mask=None, tq=512):
    """q: (B, N, H*d), k/v: (B, M, H*d), mask: (B, M) int32 or None -> (B, N, H*d)."""
    B, N, HD = q.shape
    _, M, _ = k.shape
    tq = min(tq, N)
    grid = (B, pl.cdiv(N, tq))
    q_spec = pl.BlockSpec((1, tq, HD), lambda b, qi: (b, qi, 0))
    kv_spec = pl.BlockSpec((1, M, HD), lambda b, qi: (b, 0, 0))
    o_spec = pl.BlockSpec((1, tq, HD), lambda b, qi: (b, qi, 0))
    cparams = pltpu.CompilerParams(
        dimension_semantics=("parallel", "parallel"),
        vmem_limit_bytes=_VMEM_LIMIT)
    out_shape = jax.ShapeDtypeStruct((B, N, HD), q.dtype)

    if mask is None:
        kern = functools.partial(_attn_kernel, scale=scale, heads=heads, dim_head=dim_head)
        return pl.pallas_call(
            kern, out_shape=out_shape, grid=grid,
            in_specs=[q_spec, kv_spec, kv_spec], out_specs=o_spec,
            compiler_params=cparams,
        )(q, k, v)

    mask_spec = pl.BlockSpec((1, M), lambda b, qi: (b, 0))
    kern = functools.partial(_attn_mask_kernel, scale=scale, heads=heads, dim_head=dim_head)
    return pl.pallas_call(
        kern, out_shape=out_shape, grid=grid,
        in_specs=[q_spec, kv_spec, kv_spec, mask_spec], out_specs=o_spec,
        compiler_params=cparams,
    )(q, k, v, mask)


# ----------------------------- CrossAttention module -----------------------------

def init_cross_attention_params(key, query_dim, context_dim, heads, dim_head,
                                dtype=jnp.float32):
    context_dim = query_dim if context_dim is None else context_dim
    inner_dim = heads * dim_head
    k1, k2, k3, k4, k5 = jax.random.split(key, 5)
    s = 0.05
    mk = lambda kk, shape: (jax.random.normal(kk, shape, jnp.float32) * s).astype(dtype)
    return {
        "wq": mk(k1, (query_dim, inner_dim)),
        "wk": mk(k2, (context_dim, inner_dim)),
        "wv": mk(k3, (context_dim, inner_dim)),
        "wo": mk(k4, (inner_dim, query_dim)),
        "bo": mk(k5, (query_dim,)),
    }


def cross_attention_forward(params, x, context=None, mask=None, *, heads, dim_head):
    """Pallas implementation of CrossAttention.forward (prompt_to_prompt=False)."""
    B, N, query_dim = x.shape
    inner_dim = heads * dim_head
    scale = float(dim_head) ** -0.5

    if context is None:
        # Self-attention: one fused pass reads x from HBM once and produces q, k, v.
        q2, k2, v2 = pallas_fused_linear(
            x.reshape(B * N, query_dim), [params["wq"], params["wk"], params["wv"]])
        q = q2.reshape(B, N, inner_dim)
        k = k2.reshape(B, N, inner_dim)
        v = v2.reshape(B, N, inner_dim)
    else:
        M, ctx_dim = context.shape[1], context.shape[2]
        q = pallas_linear(x.reshape(B * N, query_dim), params["wq"]).reshape(B, N, inner_dim)
        # Fused K/V projection: context is streamed from HBM once.
        k2, v2 = pallas_fused_linear(
            context.reshape(B * M, ctx_dim), [params["wk"], params["wv"]])
        k = k2.reshape(B, M, inner_dim)
        v = v2.reshape(B, M, inner_dim)

    mask_i32 = None if mask is None else mask.astype(jnp.int32)
    # Head split/merge happens inside the attention kernel on the (b n (h d)) layout;
    # no wrapper reshape/transpose HBM round-trips.
    out = pallas_attention(q, k, v, scale, heads=heads, dim_head=dim_head, mask=mask_i32)

    # to_out: Linear(inner_dim, query_dim) + Dropout(0.0) (identity)
    out = pallas_linear(out.reshape(B * N, inner_dim), params["wo"], params["bo"])
    return out.reshape(B, N, query_dim)

    # TODO(synk): prompt_to_prompt=True self-attention chunk/cat branch not implemented
    # (module default is prompt_to_prompt=False).


# ----------------------------- Pure-JAX reference -----------------------------

def reference_forward(params, x, context=None, mask=None, *, heads, dim_head):
    x = x.astype(jnp.float32)
    ctx = x if context is None else context.astype(jnp.float32)
    B, N, _ = x.shape
    M = ctx.shape[1]
    inner_dim = heads * dim_head
    scale = float(dim_head) ** -0.5

    wq = params["wq"].astype(jnp.float32)
    wk = params["wk"].astype(jnp.float32)
    wv = params["wv"].astype(jnp.float32)
    wo = params["wo"].astype(jnp.float32)
    bo = params["bo"].astype(jnp.float32)

    q = x @ wq
    k = ctx @ wk
    v = ctx @ wv

    def split_heads(t, L):
        return t.reshape(B, L, heads, dim_head).transpose(0, 2, 1, 3).reshape(
            B * heads, L, dim_head)

    qh, kh, vh = split_heads(q, N), split_heads(k, M), split_heads(v, M)
    sim = jnp.einsum("bid,bjd->bij", qh, kh) * scale
    if mask is not None:
        m = jnp.repeat(mask[:, None, :], heads, axis=0).reshape(B * heads, 1, M)
        sim = jnp.where(m, sim, -jnp.finfo(jnp.float32).max)
    attn = jax.nn.softmax(sim, axis=-1)
    out = jnp.einsum("bij,bjd->bid", attn, vh)
    out = out.reshape(B, heads, N, dim_head).transpose(0, 2, 1, 3).reshape(B, N, inner_dim)
    return out @ wo + bo


# ----------------------------- Main -----------------------------

if __name__ == "__main__":
    B, N, M = 2, 16, 8
    query_dim, context_dim = 32, 48
    heads, dim_head = 4, 16

    key = jax.random.PRNGKey(0)
    kp, kp2, kx, kc, km = jax.random.split(key, 5)

    # --- Cross-attention with mask, bf16 storage (bf16 MXU operands, f32 softmax) ---
    params = init_cross_attention_params(kp, query_dim, context_dim, heads, dim_head,
                                         dtype=jnp.bfloat16)
    x = jax.random.normal(kx, (B, N, query_dim), jnp.float32).astype(jnp.bfloat16)
    context = jax.random.normal(kc, (B, M, context_dim), jnp.float32).astype(jnp.bfloat16)
    mask = jax.random.bernoulli(km, 0.8, (B, M))
    mask = mask.at[:, 0].set(True)  # ensure at least one valid key per row

    out = cross_attention_forward(params, x, context, mask, heads=heads, dim_head=dim_head)
    out = jax.block_until_ready(out)
    ref = reference_forward(params, x, context, mask, heads=heads, dim_head=dim_head)
    np.testing.assert_allclose(np.asarray(out.astype(jnp.float32)),
                               np.asarray(ref), rtol=2e-2, atol=1e-2)

    # --- Self-attention (context=None -> context_dim == query_dim), f32 ---
    params_sa = init_cross_attention_params(kp2, query_dim, None, heads, dim_head,
                                            dtype=jnp.float32)
    x32 = jax.random.normal(kx, (B, N, query_dim), jnp.float32)
    out_sa = cross_attention_forward(params_sa, x32, None, None, heads=heads, dim_head=dim_head)
    out_sa = jax.block_until_ready(out_sa)
    ref_sa = reference_forward(params_sa, x32, None, None, heads=heads, dim_head=dim_head)
    np.testing.assert_allclose(np.asarray(out_sa), np.asarray(ref_sa), rtol=2e-2, atol=2e-3)

    print("KERNEL_OK")
</pallas_src>

<mosaic_0001>
module attributes {stable_mosaic.version = 11 : i64} {
  func.func @_linear_kernel(%arg0: i32, %arg1: memref<32x32xbf16, #tpu.memory_space<vmem>>, %arg2: memref<32x64xbf16, #tpu.memory_space<vmem>>, %arg3: memref<32x64xbf16, #tpu.memory_space<vmem>>) attributes {dimension_semantics = [#tpu.dimension_semantics<parallel>], iteration_bounds = array<i64: 1>, scalar_prefetch = 0 : i64, scratch_operands = 0 : i64, tpu.core_type = #tpu.core_type<tc>, window_params = [{transform_indices = @transform_0, window_bounds = array<i64: 32, 32>}, {pipeline_mode = #tpu.pipeline_mode<synchronous>, transform_indices = @transform_1, window_bounds = array<i64: 32, 64>}, {transform_indices = @transform_2, window_bounds = array<i64: 32, 64>}]} {
    %c0 = arith.constant 0 : index
    %c0_0 = arith.constant 0 : index
    %0 = vector.load %arg1[%c0, %c0_0] : memref<32x32xbf16, #tpu.memory_space<vmem>>, vector<32x32xbf16>
    %c0_1 = arith.constant 0 : index
    %c0_2 = arith.constant 0 : index
    %1 = vector.load %arg2[%c0_1, %c0_2] : memref<32x64xbf16, #tpu.memory_space<vmem>>, vector<32x64xbf16>
    %cst = arith.constant dense<0.000000e+00> : vector<32x64xf32>
    %2 = tpu.matmul %0, %1, %cst {dimension_numbers = #tpu.dot_dimension_numbers<[1], [0], [0], [1], [0, 0, 1, 1], [], []>} : vector<32x32xbf16>, vector<32x64xbf16>, vector<32x64xf32> -> vector<32x64xf32>
    %3 = arith.truncf %2 : vector<32x64xf32> to vector<32x64xbf16>
    %c0_3 = arith.constant 0 : index
    %c0_4 = arith.constant 0 : index
    %4 = vector.load %arg3[%c0_3, %c0_4] : memref<32x64xbf16, #tpu.memory_space<vmem>>, vector<32x64xbf16>
    tpu.vector_store %arg3[%c0_3, %c0_4], %3 {strides = array<i32>} : memref<32x64xbf16, #tpu.memory_space<vmem>>, vector<32x64xbf16>,
    return
  }
  func.func @transform_0(%arg0: i32) -> (i32, i32) {
    %c0_i32 = arith.constant 0 : i32
    %c0_i32_0 = arith.constant 0 : i32
    return %arg0, %c0_i32 : i32, i32
  }
  func.func @transform_1(%arg0: i32) -> (i32, i32) {
    %c0_i32 = arith.constant 0 : i32
    %c0_i32_0 = arith.constant 0 : i32
    %c0_i32_1 = arith.constant 0 : i32
    return %c0_i32, %c0_i32_0 : i32, i32
  }
  func.func @transform_2(%arg0: i32) -> (i32, i32) {
    %c0_i32 = arith.constant 0 : i32
    %c0_i32_0 = arith.constant 0 : i32
    return %arg0, %c0_i32 : i32, i32
  }
}

</mosaic_0001>

<llo_original>
// kernel: tpu_custom_call.1
$region0: #{tpu_custom_call.1}
  #allocation0 [shape = 'u32[]', space=smem, size = 0x4, offset = 0x4, fixed_abs, tag = 'smem constant byte address 0x4 - core index']
  #allocation1 [shape = 'u32[144,128]{1,0:T(1,128)}', space=vmem, size = 0x12000, scoped, tag = 'internal scratch']
  %s0 = inlined_call_operand.hbm [shape: bf16[32,32], index: 0, kind: input, shape index: {}]
  %s1 = inlined_call_operand.hbm [shape: bf16[32,64], index: 1, kind: input, shape index: {}]
  %s2 = inlined_call_operand.hbm [shape: bf16[32,64], index: 2, kind: output, shape index: {}]
  %s3 = sld [smem:[#allocation0]]
  $region26: #{tpu_custom_call.1} parent=0
    _
  %s5 = ssub.s32 1, %s3
  %s6 = scalar_select 0, %s5, %s3
  $region1: #{tpu_custom_call.1} parent=0
    #allocation2 [shape = 'u8[8192]{0}', space=vmem, size = 0x2000, scoped, tag = 'input window, operand 0, single buffered']
    #allocation3 [shape = 's32[1]{0}', space=sflag, size = 0x4, scoped, tag = 'scoped memory for tpu_custom_call.1']
    #allocation4 [shape = 's32[1]{0}', space=sflag, size = 0x4, scoped, tag = 'scoped memory for tpu_custom_call.1']
    #allocation5 [shape = 'u8[8192]{0}', space=vmem, size = 0x2000, scoped, tag = 'input window, operand 1, single buffered']
    #allocation6 [shape = 's32[1]{0}', space=sflag, size = 0x4, scoped, tag = 'scoped memory for tpu_custom_call.1']
    #allocation7 [shape = 'u8[8192]{0}', space=vmem, size = 0x2000, scoped, tag = 'output window, operand 0, single buffered']
    %7 = vsyncpa [#allocation3], 0
    %8 = vsyncpa [#allocation6], 0
    %9 = vsyncpa [#allocation4], 0
    // Predicated region
    $region2: #{tpu_custom_call.1} parent=1 // pred_check
      _
    $region3: #{tpu_custom_call.1} parent=1 // pred_check_branch
      %11 = sbr.rel (0) target = $region5
    $region4: #{tpu_custom_call.1} parent=1 // pred_region
      %s13 = ssub.s32 256, 256
      %14 = vsyncadd [#allocation3], %s13
      %s15 = sshll.u32 [#allocation2], 4
      %s16 = int_to_ptr.vmem [resolvable:$true] %s15
      %21 = dma.hbm_to_vmem [thread:$0]  %s0, 256, %s16, [#allocation3], 64, 64, 4
    $region5: #{tpu_custom_call.1} parent=1 // pred_fallthru
      _
    // Predicated region
    $region6: #{tpu_custom_call.1} parent=1 // pred_check
      _
    $region7: #{tpu_custom_call.1} parent=1 // pred_check_branch
      %23 = sbr.rel (0) target = $region9
    $region8: #{tpu_custom_call.1} parent=1 // pred_region
      %s25 = ssub.s32 256, 256
      %26 = vsyncadd [#allocation6], %s25
      %s27 = sshll.u32 [#allocation5], 4
      %s28 = int_to_ptr.vmem [resolvable:$true] %s27
      %33 = dma.hbm_to_vmem [thread:$0]  %s1, 256, %s28, [#allocation6], 64, 64, 4
    $region9: #{tpu_custom_call.1} parent=1 // pred_fallthru
      _
    // Predicated region
    $region10: #{tpu_custom_call.1} parent=1 // pred_check
      _
    $region11: #{tpu_custom_call.1} parent=1 // pred_check_branch
      %35 = sbr.rel (0) target = $region13
    $region12: #{tpu_custom_call.1} parent=1 // pred_region
      %36 = dma.done [#allocation3], 256
    $region13: #{tpu_custom_call.1} parent=1 // pred_fallthru
      _
    // Predicated region
    $region14: #{tpu_custom_call.1} parent=1 // pred_check
      _
    $region15: #{tpu_custom_call.1} parent=1 // pred_check_branch
      %38 = sbr.rel (0) target = $region17
    $region16: #{tpu_custom_call.1} parent=1 // pred_region
      %39 = dma.done [#allocation6], 256
    $region17: #{tpu_custom_call.1} parent=1 // pred_fallthru
      _
    %v41 = vld [vmem:[#allocation2] sm:$0xf]
    %v42 = vld [vmem:[#allocation2 + $0x4] sm:$0xf]
    %v43 = vld [vmem:[#allocation2 + $0x8] sm:$0xf]
    %v44 = vld [vmem:[#allocation2 + $0xc] sm:$0xf]
    %v45 = vld [vmem:[#allocation5] sm:$0xf]
    %v46 = vld [vmem:[#allocation5 + $0x4] sm:$0xf]
    %v47 = vld [vmem:[#allocation5 + $0x8] sm:$0xf]
    %v48 = vld [vmem:[#allocation5 + $0xc] sm:$0xf]
    %v53 = vunpack.c.l.b16 %v41
    %v54 = vunpack.c.l.b16 %v42
    %v55 = vunpack.c.l.b16 %v43
    %v56 = vunpack.c.l.b16 %v44
    %v57 = vpack.c.b16 %v54, %v53
    %v58 = vpack.c.b16 %v56, %v55
    %v63 = vunpack.c.l.b16 %v45
    %v64 = vunpack.c.l.b16 %v46
    %v65 = vunpack.c.l.b16 %v47
    %v66 = vunpack.c.l.b16 %v48
    %v67 = vpack.c.b16 %v64, %v63
    %v68 = vpack.c.b16 %v66, %v65
    %vm71 = vcmask 261120
    %v73 = vsel %vm71, %v57, 0
    %v76 = vsel %vm71, %v58, 0
    %78 = vmatprep.subr.bf16.mxu0 0
    %79 = vmatpush1.bf16.msra.mxu0 %v67
    %80 = vmatprep.subr.bf16.mxu0 0
    %81 = vmatpush1.bf16.msra.mxu0 %v68
    %82 = vmatprep.subr.bf16.mxu0 0
    %83 = vmatpush1.bf16.msra.mxu0 0
    %84 = vmatprep.subr.bf16.mxu0 0
    %85 = vmatpush1.bf16.msra.mxu0 0
    %86 = vmatprep.subr.bf16.mxu0 0
    %87 = vmatpush1.bf16.msra.mxu0 0
    %88 = vmatprep.subr.bf16.mxu0 0
    %89 = vmatpush1.bf16.msra.mxu0 0
    %90 = vmatprep.subr.bf16.mxu0 0
    %91 = vmatpush1.bf16.msra.mxu0 0
    %92 = vmatprep.subr.bf16.mxu0 0
    %93 = vmatpush1.bf16.msra.mxu0 0
    %94 = vmatprep.subr.bf16.mxu0 0
    %95 = vmatpush1.bf16.msra.mxu0 0
    %96 = vmatprep.subr.bf16.mxu0 0
    %97 = vmatpush1.bf16.msra.mxu0 0
    %98 = vmatprep.subr.bf16.mxu0 0
    %99 = vmatpush1.bf16.msra.mxu0 0
    %100 = vmatprep.subr.bf16.mxu0 0
    %101 = vmatpush1.bf16.msra.mxu0 0
    %102 = vmatprep.subr.bf16.mxu0 0
    %103 = vmatpush1.bf16.msra.mxu0 0
    %104 = vmatprep.subr.bf16.mxu0 0
    %105 = vmatpush1.bf16.msra.mxu0 0
    %106 = vmatprep.subr.bf16.mxu0 0
    %107 = vmatpush1.bf16.msra.mxu0 0
    %108 = vmatprep.subr.bf16.mxu0 0
    %109 = vmatpush1.bf16.msra.mxu0 0
    %110 = vmatprep.mubr.bf16.mxu0 0
    %111 = vmatmul.mubr.bf16.gmra.mrb[0].mxu0 %v73
    %v112 = vpop.f32.mrb[0].mxu0
    %v113 = vadd.f32 0.0, %v112
    %v114 = vpop.f32.mrb[0].mxu0
    %v115 = vpop.f32.mrb[0].mxu0
    %v116 = vadd.f32 0.0, %v115
    %v117 = vpop.f32.mrb[0].mxu0
    %118 = vmatprep.mubr.bf16.mxu0 0
    %119 = vmatmul.mubr.bf16.gmra.mrb[0].mxu0 %v76
    %v120 = vpop.f32.mrb[0].mxu0
    %v121 = vadd.f32 0.0, %v120
    %v122 = vpop.f32.mrb[0].mxu0
    %v123 = vpop.f32.mrb[0].mxu0
    %v124 = vadd.f32 0.0, %v123
    %v125 = vpop.f32.mrb[0].mxu0
    %126 = vdwg.mxu0
    %v127 = vpack.c.bf16 %v116, %v113
    %v128 = vpack.c.bf16 %v124, %v121
    %v131 = vunpack.c.l.b16 %v127
    %v132 = vunpack.c.h.b16 %v127
    %v133 = vunpack.c.l.b16 %v128
    %v134 = vunpack.c.h.b16 %v128
    %v135 = vpack.c.b16 %v131, %v131
    %v136 = vpack.c.b16 %v132, %v132
    %v137 = vpack.c.b16 %v133, %v133
    %v138 = vpack.c.b16 %v134, %v134
    %vm143 = vcmask 519168
    %144 = vst.msk [vmem:[#allocation7] sm:$0xf] %vm143, %v135
    %145 = vst.msk [vmem:[#allocation7 + $0x4] sm:$0xf] %vm143, %v136
    %146 = vst.msk [vmem:[#allocation7 + $0x8] sm:$0xf] %vm143, %v137
    %147 = vst.msk [vmem:[#allocation7 + $0xc] sm:$0xf] %vm143, %v138
    // Predicated region
    $region18: #{tpu_custom_call.1} parent=1 // pred_check
      _
    $region19: #{tpu_custom_call.1} parent=1 // pred_check_branch
      %149 = sbr.rel (0) target = $region21
    $region20: #{tpu_custom_call.1} parent=1 // pred_region
      %s151 = ssub.s32 256, 256
      %152 = vsyncadd [#allocation4], %s151
      %s153 = sshll.u32 [#allocation7], 4
      %s154 = int_to_ptr.vmem [resolvable:$true] %s153
      %159 = dma.vmem_to_hbm [thread:$0]  %s154, 256, %s2, [#allocation4], 64, 64, 4
    $region21: #{tpu_custom_call.1} parent=1 // pred_fallthru
      _
    // Predicated region
    $region22: #{tpu_custom_call.1} parent=1 // pred_check
      _
    $region23: #{tpu_custom_call.1} parent=1 // pred_check_branch
      %161 = sbr.rel (0) target = $region25
    $region24: #{tpu_custom_call.1} parent=1 // pred_region
      %162 = dma.done [#allocation4], 256
    $region25: #{tpu_custom_call.1} parent=1 // pred_fallthru
      _
    %163 = vsyncpa [#allocation3], 1
    %164 = vsyncpa [#allocation6], 1
    %165 = vsyncpa [#allocation4], 1

</llo_original>
